<compile_context>
chip_gen: v5e
topology: v5e:2x2
jax: 0.10.0
libtpu: 0.0.40
codegen_flags: <defaults>
</compile_context>

<pallas_src>
import functools

import jax
import jax.numpy as jnp
from jax.experimental import pallas as pl
from jax.experimental.pallas import tpu as pltpu

_LANE = 128          # lane width of a vreg
_SUBCHUNK = 256      # lanes per inner fori_loop chunk (bounds vreg pressure)
_PAD_NEG = -1.0e30   # logit value for padded K rows -> never in sparsemax support


def _round_up(x, mult):
    return (x + mult - 1) // mult * mult


def _choose_lane_tile(N, row_tile):
    # Tile must be a multiple of 128 lanes (ragged last block is fine).
    # Cap at ~N/2 so the grid has >=2 steps whenever N > 128 (v7x: 2 TCs).
    if N > _LANE:
        cap = _round_up(-(-N // 2), _LANE)
    else:
        cap = _LANE
    return max(_LANE, min(_round_up(row_tile, _LANE), cap))


def _choose_sub(tile):
    for sub in (_SUBCHUNK, _LANE):
        if tile % sub == 0:
            return sub
    return tile


def _gce_forward_kernel(m_ref, s_ref, dT_ref, o_ref, *, n_real_k, sub):
    # Block shapes: m_ref (1, TN), s_ref (KP, TN), dT_ref (DP, KP), o_ref (DP, TN)
    KP, TN = s_ref.shape
    dT = dT_ref[...].astype(jnp.float32)          # (DP, KP) tiny, vreg-resident
    n_sub = TN // sub                             # static

    def compute(off):
        z = s_ref[:, pl.ds(off, sub)].astype(jnp.float32)       # (KP, sub)

        # ---- sort-free sparsemax along the K (sublane) axis ----
        # rank_i = #{j : z_j >= z_i},  csum_i = sum_{j : z_j >= z_i} z_j
        # Only the n_real_k real rows can contribute (padded rows are -1e30).
        rank = jnp.zeros_like(z)
        csum = jnp.zeros_like(z)
        for j in range(n_real_k):                 # K small & static -> unrolled
            zj = z[j:j + 1, :]                    # (1, sub), sublane-broadcast
            ge = zj >= z                          # (KP, sub) bool
            rank = rank + jnp.where(ge, 1.0, 0.0)
            csum = csum + jnp.where(ge, zj, 0.0)
        support = (1.0 + rank * z) > csum                        # (KP, sub)
        k = jnp.sum(jnp.where(support, 1.0, 0.0), axis=0, keepdims=True)   # (1,sub)
        zs = jnp.sum(jnp.where(support, z, 0.0), axis=0, keepdims=True)    # (1,sub)
        tau = (zs - 1.0) / k
        p = jnp.maximum(z - tau, 0.0)                            # (KP, sub)

        # ---- exp(m) * p (cheap: K rows, not D), then contract on the MXU ----
        exp_m = jnp.exp(m_ref[:, pl.ds(off, sub)].astype(jnp.float32))     # (1,sub)
        scaled = exp_m * p                                                  # (KP,sub)
        acc = jnp.dot(dT, scaled, preferred_element_type=jnp.float32,
                      precision=jax.lax.Precision.HIGHEST)                  # (DP,sub)
        o_ref[:, pl.ds(off, sub)] = acc.astype(o_ref.dtype)

    if n_sub == 1:
        compute(0)
    else:
        def body(i, carry):
            compute(pl.multiple_of(i * sub, sub))
            return carry
        jax.lax.fori_loop(0, n_sub, body, 0)


def gce_forward(m, s, d, *, row_tile=8192, out_dtype=jnp.float32,
                transposed_output=False):
    """out = exp(m) * sparsemax(s, axis=1) @ d.

    Returns (N, D) by default (module semantics). transposed_output=True
    returns (D, N) and skips the output transpose; out_dtype=jnp.bfloat16
    halves HBM writeback when downstream tolerates it.
    """
    N, K = s.shape
    Kd, D = d.shape
    assert Kd == K

    KP = _round_up(K, 8)           # sublane-align the contraction dim
    DP = _round_up(D, 8)           # sublane-align the output rows (dense vst)

    mT = m.reshape(1, N).astype(jnp.float32)                     # (1, N)
    sT = s.T.astype(jnp.float32)                                  # (K, N)
    if KP != K:
        sT = jnp.concatenate(
            [sT, jnp.full((KP - K, N), _PAD_NEG, jnp.float32)], axis=0)
    dT = d.T.astype(jnp.float32)                                  # (D, K)
    dT = jnp.pad(dT, ((0, DP - D), (0, KP - K)))                  # zeros -> no-op rows

    tile = _choose_lane_tile(N, row_tile)
    sub = _choose_sub(tile)
    grid = (pl.cdiv(N, tile),)     # ragged last block handled by Pallas masking

    kernel = functools.partial(_gce_forward_kernel, n_real_k=K, sub=sub)
    outT = pl.pallas_call(
        kernel,
        out_shape=jax.ShapeDtypeStruct((DP, N), out_dtype),
        grid_spec=pltpu.PrefetchScalarGridSpec(
            num_scalar_prefetch=0,
            grid=grid,
            in_specs=[
                pl.BlockSpec((1, tile), lambda i: (0, i)),    # m^T
                pl.BlockSpec((KP, tile), lambda i: (0, i)),   # s^T (padded K)
                pl.BlockSpec((DP, KP), lambda i: (0, 0)),     # d^T, VMEM-resident
            ],
            out_specs=pl.BlockSpec((DP, tile), lambda i: (0, i)),
        ),
        compiler_params=pltpu.CompilerParams(
            dimension_semantics=("parallel",),                # rows independent
        ),
    )(mT, sT, dT)

    if transposed_output:
        return outT[:D] if DP != D else outT
    return outT[:D].T              # one fused slice+transpose back to (N, D)


# ---------------- pure-JAX reference (sort-based sparsemax) ----------------
def _sparsemax_ref(z):
    K = z.shape[1]
    z_sorted = jnp.sort(z, axis=1)[:, ::-1]
    cssv = jnp.cumsum(z_sorted, axis=1)
    ks = jnp.arange(1, K + 1, dtype=z.dtype)
    cond = 1.0 + ks * z_sorted > cssv
    k = jnp.sum(cond, axis=1, keepdims=True)
    tau = (jnp.take_along_axis(cssv, k.astype(jnp.int32) - 1, axis=1) - 1.0) / k
    return jnp.maximum(z - tau, 0.0)


def _gce_forward_ref(m, s, d):
    p = _sparsemax_ref(s)
    return jnp.matmul(jnp.exp(m) * p, d, precision=jax.lax.Precision.HIGHEST)


if __name__ == "__main__":
    def make_inputs(key, N, K, D):
        km, ks, kd = jax.random.split(key, 3)
        # PyTorch init is 0*rand for m/d and 0.01*rand for s; use small
        # non-zero values so the forward pass exercises real compute.
        m = 0.1 * jax.random.uniform(km, (N, 1), dtype=jnp.float32)
        s = 0.01 * jax.random.uniform(ks, (N, K), dtype=jnp.float32)
        d = jax.random.normal(kd, (K, D), dtype=jnp.float32)
        return m, s, d

    key = jax.random.PRNGKey(0)
    cases = [
        (16, 4, 32),      # tiny module-sized problem (single partial block)
        (1000, 4, 32),    # ragged N, 2 grid steps, inner sub-chunk loop
        (300, 6, 23),     # odd K / D -> exercises K/D sublane padding
    ]
    for idx, (N, K, D) in enumerate(cases):
        m, s, d = make_inputs(jax.random.fold_in(key, idx), N, K, D)
        out = jax.block_until_ready(gce_forward(m, s, d))
        ref = _gce_forward_ref(m, s, d)
        assert out.shape == (N, D)
        err = jnp.max(jnp.abs(out - ref))
        assert jnp.allclose(out, ref, atol=1e-4, rtol=1e-4), (
            f"case{idx} N={N} K={K} D={D} max abs err = {err}")

    # bf16 writeback path (recommended when downstream tolerates it).
    m, s, d = make_inputs(jax.random.fold_in(key, 99), 1000, 4, 32)
    out_bf16 = jax.block_until_ready(gce_forward(m, s, d, out_dtype=jnp.bfloat16))
    ref = _gce_forward_ref(m, s, d)
    assert jnp.allclose(out_bf16.astype(jnp.float32), ref, atol=2e-2, rtol=2e-2)

    print("KERNEL_OK")
</pallas_src>

<mosaic_0001>
module attributes {stable_mosaic.version = 11 : i64} {
  func.func @_gce_forward_kernel(%arg0: i32, %arg1: memref<1x128xf32, #tpu.memory_space<vmem>>, %arg2: memref<8x128xf32, #tpu.memory_space<vmem>>, %arg3: memref<32x8xf32, #tpu.memory_space<vmem>>, %arg4: memref<32x128xf32, #tpu.memory_space<vmem>>) attributes {dimension_semantics = [#tpu.dimension_semantics<parallel>], iteration_bounds = array<i64: 1>, scalar_prefetch = 0 : i64, scratch_operands = 0 : i64, tpu.core_type = #tpu.core_type<tc>, window_params = [{transform_indices = @transform_0, window_bounds = array<i64: 1, 128>}, {transform_indices = @transform_1, window_bounds = array<i64: 8, 128>}, {pipeline_mode = #tpu.pipeline_mode<synchronous>, transform_indices = @transform_2, window_bounds = array<i64: 32, 8>}, {transform_indices = @transform_3, window_bounds = array<i64: 32, 128>}]} {
    %c0 = arith.constant 0 : index
    %c0_0 = arith.constant 0 : index
    %0 = vector.load %arg3[%c0, %c0_0] : memref<32x8xf32, #tpu.memory_space<vmem>>, vector<32x8xf32>
    %c0_1 = arith.constant 0 : index
    %c0_2 = arith.constant 0 : index
    %1 = vector.load %arg2[%c0_1, %c0_2] : memref<8x128xf32, #tpu.memory_space<vmem>>, vector<8x128xf32>
    %cst = arith.constant 0.000000e+00 : f32
    %2 = vector.broadcast %cst : f32 to vector<8x128xf32>
    %cst_3 = arith.constant 0.000000e+00 : f32
    %3 = vector.broadcast %cst_3 : f32 to vector<8x128xf32>
    %4 = vector.extract_strided_slice %1 {offsets = [0, 0], sizes = [1, 128], strides = [1, 1]} : vector<8x128xf32> to vector<1x128xf32>
    %5 = vector.broadcast %4 : vector<1x128xf32> to vector<8x128xf32>
    %6 = arith.cmpf oge, %5, %1 : vector<8x128xf32>
    %cst_4 = arith.constant 1.000000e+00 : f32
    %cst_5 = arith.constant 0.000000e+00 : f32
    %7 = vector.broadcast %cst_4 : f32 to vector<8x128xf32>
    %8 = vector.broadcast %cst_5 : f32 to vector<8x128xf32>
    %9 = arith.select %6, %7, %8 : vector<8x128xi1>, vector<8x128xf32>
    %10 = arith.addf %2, %9 : vector<8x128xf32>
    %cst_6 = arith.constant 0.000000e+00 : f32
    %11 = vector.shape_cast %4 : vector<1x128xf32> to vector<1x128xf32>
    %12 = vector.broadcast %11 : vector<1x128xf32> to vector<8x128xf32>
    %13 = vector.broadcast %cst_6 : f32 to vector<8x128xf32>
    %14 = arith.select %6, %12, %13 : vector<8x128xi1>, vector<8x128xf32>
    %15 = arith.addf %3, %14 : vector<8x128xf32>
    %16 = vector.extract_strided_slice %1 {offsets = [1, 0], sizes = [1, 128], strides = [1, 1]} : vector<8x128xf32> to vector<1x128xf32>
    %17 = vector.broadcast %16 : vector<1x128xf32> to vector<8x128xf32>
    %18 = arith.cmpf oge, %17, %1 : vector<8x128xf32>
    %cst_7 = arith.constant 1.000000e+00 : f32
    %cst_8 = arith.constant 0.000000e+00 : f32
    %19 = vector.broadcast %cst_7 : f32 to vector<8x128xf32>
    %20 = vector.broadcast %cst_8 : f32 to vector<8x128xf32>
    %21 = arith.select %18, %19, %20 : vector<8x128xi1>, vector<8x128xf32>
    %22 = arith.addf %10, %21 : vector<8x128xf32>
    %cst_9 = arith.constant 0.000000e+00 : f32
    %23 = vector.shape_cast %16 : vector<1x128xf32> to vector<1x128xf32>
    %24 = vector.broadcast %23 : vector<1x128xf32> to vector<8x128xf32>
    %25 = vector.broadcast %cst_9 : f32 to vector<8x128xf32>
    %26 = arith.select %18, %24, %25 : vector<8x128xi1>, vector<8x128xf32>
    %27 = arith.addf %15, %26 : vector<8x128xf32>
    %28 = vector.extract_strided_slice %1 {offsets = [2, 0], sizes = [1, 128], strides = [1, 1]} : vector<8x128xf32> to vector<1x128xf32>
    %29 = vector.broadcast %28 : vector<1x128xf32> to vector<8x128xf32>
    %30 = arith.cmpf oge, %29, %1 : vector<8x128xf32>
    %cst_10 = arith.constant 1.000000e+00 : f32
    %cst_11 = arith.constant 0.000000e+00 : f32
    %31 = vector.broadcast %cst_10 : f32 to vector<8x128xf32>
    %32 = vector.broadcast %cst_11 : f32 to vector<8x128xf32>
    %33 = arith.select %30, %31, %32 : vector<8x128xi1>, vector<8x128xf32>
    %34 = arith.addf %22, %33 : vector<8x128xf32>
    %cst_12 = arith.constant 0.000000e+00 : f32
    %35 = vector.shape_cast %28 : vector<1x128xf32> to vector<1x128xf32>
    %36 = vector.broadcast %35 : vector<1x128xf32> to vector<8x128xf32>
    %37 = vector.broadcast %cst_12 : f32 to vector<8x128xf32>
    %38 = arith.select %30, %36, %37 : vector<8x128xi1>, vector<8x128xf32>
    %39 = arith.addf %27, %38 : vector<8x128xf32>
    %40 = vector.extract_strided_slice %1 {offsets = [3, 0], sizes = [1, 128], strides = [1, 1]} : vector<8x128xf32> to vector<1x128xf32>
    %41 = vector.broadcast %40 : vector<1x128xf32> to vector<8x128xf32>
    %42 = arith.cmpf oge, %41, %1 : vector<8x128xf32>
    %cst_13 = arith.constant 1.000000e+00 : f32
    %cst_14 = arith.constant 0.000000e+00 : f32
    %43 = vector.broadcast %cst_13 : f32 to vector<8x128xf32>
    %44 = vector.broadcast %cst_14 : f32 to vector<8x128xf32>
    %45 = arith.select %42, %43, %44 : vector<8x128xi1>, vector<8x128xf32>
    %46 = arith.addf %34, %45 : vector<8x128xf32>
    %cst_15 = arith.constant 0.000000e+00 : f32
    %47 = vector.shape_cast %40 : vector<1x128xf32> to vector<1x128xf32>
    %48 = vector.broadcast %47 : vector<1x128xf32> to vector<8x128xf32>
    %49 = vector.broadcast %cst_15 : f32 to vector<8x128xf32>
    %50 = arith.select %42, %48, %49 : vector<8x128xi1>, vector<8x128xf32>
    %51 = arith.addf %39, %50 : vector<8x128xf32>
    %52 = arith.mulf %46, %1 : vector<8x128xf32>
    %cst_16 = arith.constant 1.000000e+00 : f32
    %53 = vector.broadcast %cst_16 : f32 to vector<8x128xf32>
    %54 = arith.addf %53, %52 : vector<8x128xf32>
    %55 = arith.cmpf ogt, %54, %51 : vector<8x128xf32>
    %cst_17 = arith.constant 1.000000e+00 : f32
    %cst_18 = arith.constant 0.000000e+00 : f32
    %56 = vector.broadcast %cst_17 : f32 to vector<8x128xf32>
    %57 = vector.broadcast %cst_18 : f32 to vector<8x128xf32>
    %58 = arith.select %55, %56, %57 : vector<8x128xi1>, vector<8x128xf32>
    %cst_19 = arith.constant dense<0.000000e+00> : vector<128xf32>
    %59 = vector.multi_reduction <add>, %58, %cst_19 [0] : vector<8x128xf32> to vector<128xf32>
    %60 = vector.shape_cast %59 : vector<128xf32> to vector<1x128xf32>
    %cst_20 = arith.constant 0.000000e+00 : f32
    %61 = vector.broadcast %cst_20 : f32 to vector<8x128xf32>
    %62 = arith.select %55, %1, %61 : vector<8x128xi1>, vector<8x128xf32>
    %cst_21 = arith.constant dense<0.000000e+00> : vector<128xf32>
    %63 = vector.multi_reduction <add>, %62, %cst_21 [0] : vector<8x128xf32> to vector<128xf32>
    %64 = vector.shape_cast %63 : vector<128xf32> to vector<1x128xf32>
    %cst_22 = arith.constant 1.000000e+00 : f32
    %65 = vector.broadcast %cst_22 : f32 to vector<1x128xf32>
    %66 = arith.subf %64, %65 : vector<1x128xf32>
    %67 = arith.divf %66, %60 : vector<1x128xf32>
    %68 = vector.broadcast %67 : vector<1x128xf32> to vector<8x128xf32>
    %69 = arith.subf %1, %68 : vector<8x128xf32>
    %cst_23 = arith.constant 0.000000e+00 : f32
    %70 = vector.broadcast %cst_23 : f32 to vector<8x128xf32>
    %71 = arith.maximumf %69, %70 : vector<8x128xf32>
    %c0_24 = arith.constant 0 : index
    %c0_25 = arith.constant 0 : index
    %72 = vector.load %arg1[%c0_24, %c0_25] : memref<1x128xf32, #tpu.memory_space<vmem>>, vector<1x128xf32>
    %73 = math.exp %72 : vector<1x128xf32>
    %74 = vector.broadcast %73 : vector<1x128xf32> to vector<8x128xf32>
    %75 = arith.mulf %74, %71 : vector<8x128xf32>
    %cst_26 = arith.constant dense<0.000000e+00> : vector<32x128xf32>
    %76 = tpu.matmul %0, %75, %cst_26 {dimension_numbers = #tpu.dot_dimension_numbers<[1], [0], [0], [1], [0, 0, 1, 1], [], []>, precision = #tpu.contract_precision<fp32>} : vector<32x8xf32>, vector<8x128xf32>, vector<32x128xf32> -> vector<32x128xf32>
    %c0_27 = arith.constant 0 : index
    %c0_28 = arith.constant 0 : index
    %77 = vector.load %arg4[%c0_27, %c0_28] : memref<32x128xf32, #tpu.memory_space<vmem>>, vector<32x128xf32>
    tpu.vector_store %arg4[%c0_27, %c0_28], %76 {strides = array<i32>} : memref<32x128xf32, #tpu.memory_space<vmem>>, vector<32x128xf32>,
    return
  }
  func.func @transform_0(%arg0: i32) -> (i32, i32) {
    %c0_i32 = arith.constant 0 : i32
    %c0_i32_0 = arith.constant 0 : i32
    return %c0_i32, %arg0 : i32, i32
  }
  func.func @transform_1(%arg0: i32) -> (i32, i32) {
    %c0_i32 = arith.constant 0 : i32
    %c0_i32_0 = arith.constant 0 : i32
    return %c0_i32, %arg0 : i32, i32
  }
  func.func @transform_2(%arg0: i32) -> (i32, i32) {
    %c0_i32 = arith.constant 0 : i32
    %c0_i32_0 = arith.constant 0 : i32
    %c0_i32_1 = arith.constant 0 : i32
    return %c0_i32, %c0_i32_0 : i32, i32
  }
  func.func @transform_3(%arg0: i32) -> (i32, i32) {
    %c0_i32 = arith.constant 0 : i32
    %c0_i32_0 = arith.constant 0 : i32
    return %c0_i32, %arg0 : i32, i32
  }
}

</mosaic_0001>

<llo_original>
// kernel: tpu_custom_call.1
$region0: #{tpu_custom_call.1}
  #allocation0 [shape = 'u32[]', space=smem, size = 0x4, offset = 0x4, fixed_abs, tag = 'smem constant byte address 0x4 - core index']
  #allocation1 [shape = 'u32[72,128]{1,0:T(1,128)}', space=vmem, size = 0x9000, scoped, tag = 'internal scratch']
  %s0 = inlined_call_operand.vmem [shape: f32[1,16], index: 0, kind: input, shape index: {}]
  %s1 = inlined_call_operand.vmem [shape: f32[8,16], index: 1, kind: input, shape index: {}]
  %s2 = inlined_call_operand.vmem [shape: f32[32,8], index: 2, kind: input, shape index: {}]
  %s3 = inlined_call_operand.vmem [shape: f32[32,16], index: 3, kind: output, shape index: {}]
  %s4 = sld [smem:[#allocation0]]
  $region22: #{tpu_custom_call.1} parent=0
    _
  %s6 = ssub.s32 1, %s4
  %s7 = scalar_select 0, %s6, %s4
  // Predicated region
  $region2: #{tpu_custom_call.1} parent=0 // pred_check
    _
  $region3: #{tpu_custom_call.1} parent=0 // pred_check_branch
    %9 = sbr.rel (0) target = $region5
  $region4: #{tpu_custom_call.1} parent=0 // pred_region
    _
  $region5: #{tpu_custom_call.1} parent=0 // pred_fallthru
    _
  // Predicated region
  $region6: #{tpu_custom_call.1} parent=0 // pred_check
    _
  $region7: #{tpu_custom_call.1} parent=0 // pred_check_branch
    %11 = sbr.rel (0) target = $region9
  $region8: #{tpu_custom_call.1} parent=0 // pred_region
    _
  $region9: #{tpu_custom_call.1} parent=0 // pred_fallthru
    _
  // Predicated region
  $region10: #{tpu_custom_call.1} parent=0 // pred_check
    _
  $region11: #{tpu_custom_call.1} parent=0 // pred_check_branch
    %13 = sbr.rel (0) target = $region13
  $region12: #{tpu_custom_call.1} parent=0 // pred_region
    _
  $region13: #{tpu_custom_call.1} parent=0 // pred_fallthru
    _
  %v14 = vld [vmem:[%s2] sm:$0xff]
  %v15 = vld [vmem:[%s2 + $0x8] sm:$0xff]
  %v16 = vld [vmem:[%s2 + $0x10] sm:$0xff]
  %v17 = vld [vmem:[%s2 + $0x18] sm:$0xff]
  %v18 = vld [vmem:[%s1] sm:$0xff]
  %v19 = vperm.slane %v18, 0
  %vm20 = vcmp.ge.f32.partialorder %v19, %v18
  %v21 = vsel %vm20, 1.0, 0.0
  %v22 = vadd.f32 %v21, 0.0
  %v23 = vsel %vm20, %v19, 0.0
  %v24 = vadd.f32 %v23, 0.0
  %v25 = vperm.slane %v18, 1
  %vm26 = vcmp.ge.f32.partialorder %v25, %v18
  %v27 = vsel %vm26, 1.0, 0.0
  %v28 = vadd.f32 %v22, %v27
  %v29 = vsel %vm26, %v25, 0.0
  %v30 = vadd.f32 %v24, %v29
  %v31 = vperm.slane %v18, 2
  %vm32 = vcmp.ge.f32.partialorder %v31, %v18
  %v33 = vsel %vm32, 1.0, 0.0
  %v34 = vadd.f32 %v28, %v33
  %v35 = vsel %vm32, %v31, 0.0
  %v36 = vadd.f32 %v30, %v35
  %v37 = vperm.slane %v18, 3
  %vm38 = vcmp.ge.f32.partialorder %v37, %v18
  %v39 = vsel %vm38, 1.0, 0.0
  %v40 = vadd.f32 %v34, %v39
  %v41 = vsel %vm38, %v37, 0.0
  %v42 = vadd.f32 %v36, %v41
  %v43 = vmul.f32 %v40, %v18
  %v44 = vadd.f32 %v43, 1.0
  %vm45 = vcmp.gt.f32.partialorder %v44, %v42
  %v46 = vsel %vm45, 1.0, 0.0
  %v47 = vrot.slane %v46, 4
  %v48 = vadd.f32 %v46, %v47
  %v49 = vrot.slane %v48, 2
  %v50 = vadd.f32 %v48, %v49
  %v51 = vrot.slane %v50, 1
  %v52 = vadd.f32 %v50, %v51
  %v53 = vsel %vm45, %v18, 0.0
  %v54 = vrot.slane %v53, 4
  %v55 = vadd.f32 %v53, %v54
  %v56 = vrot.slane %v55, 2
  %v57 = vadd.f32 %v55, %v56
  %v58 = vrot.slane %v57, 1
  %v59 = vadd.f32 %v57, %v58
  %v60 = vsub.f32 %v59, 1.0
  %v61 = vrcp.pop %v52
  %v62 = vmul.f32 %v52, %v61
  %v63 = vsub.f32 1.0, %v62
  %v64 = vmul.f32 %v61, %v63
  %v65 = vadd.f32 %v61, %v64
  %vm66 = vweird.f32 %v52
  %vm67 = vweird.f32 %v61
  %vm68 = vmor %vm66, %vm67
  %v69 = vsel %vm68, %v61, %v65
  %v70 = vand.u32 2147483647, %v52
  %vm71 = vcmp.eq.f32.partialorder %v70, 8.507059e+37
  %v72 = vand.u32 %v52, 2147483648
  %v73 = vor.u32 1.1754944e-38, %v72
  %v74 = vsel %vm71, %v73, %v69
  %v75 = vmul.f32 %v60, %v74
  %v76 = vsub.f32 %v18, %v75
  %v77 = vmax.f32 %v76, 0.0
  %v78 = vld [vmem:[%s0] sm:$0x1]
  %v79 = vmul.f32 %v78, 1.442695
  %v80 = vpow.pop %v79
  %v82 = vperm.slane %v80, 0
  %v84 = vmul.f32 %v82, %v77
  %vm85 = vcmask 64512
  %v87 = vsel %vm85, %v14, 0
  %v90 = vsel %vm85, %v15, 0
  %v93 = vsel %vm85, %v16, 0
  %v96 = vsel %vm85, %v17, 0
  %98 = vmatpush.msra.mxu0 0.0
  %99 = vmatpush.msra.mxu0 0.0
  %100 = vmatpush.msra.mxu0 0.0
  %101 = vmatpush.msra.mxu0 0.0
  %102 = vmatpush.msra.mxu0 0.0
  %103 = vmatpush.msra.mxu0 0.0
  %104 = vmatpush.msra.mxu0 0.0
  %105 = vmatpush.msra.mxu0 0.0
  %106 = vmatpush.msra.mxu0 0.0
  %107 = vmatpush.msra.mxu0 0.0
  %108 = vmatpush.msra.mxu0 0.0
  %109 = vmatpush.msra.mxu0 0.0
  %110 = vmatpush.msra.mxu0 0.0
  %111 = vmatpush.msra.mxu0 0.0
  %112 = vmatpush.msra.mxu0 0.0
  %v113 = vand.u32 %v84, 4294901760
  %114 = vmatpush.msra.mxu0 %v113
  %v115 = vand.u32 %v87, 4294901760
  %v116 = vsub.f32 %v87, %v115
  %v117 = vand.u32 %v116, 4294901760
  %v118 = vsub.f32 %v116, %v117
  %v119 = vand.u32 %v118, 4294901760
  %120 = vmatmul.f32.gmra.mxu0 %v119
  %v121 = vpop.f32.mrf.mxu0
  %v122 = vadd.f32 0.0, %v121
  %v123 = vand.u32 %v90, 4294901760
  %v124 = vsub.f32 %v90, %v123
  %v125 = vand.u32 %v124, 4294901760
  %v126 = vsub.f32 %v124, %v125
  %v127 = vand.u32 %v126, 4294901760
  %128 = vmatmul.f32.gmra.mxu0 %v127
  %v129 = vpop.f32.mrf.mxu0
  %v130 = vadd.f32 0.0, %v129
  %v131 = vand.u32 %v93, 4294901760
  %v132 = vsub.f32 %v93, %v131
  %v133 = vand.u32 %v132, 4294901760
  %v134 = vsub.f32 %v132, %v133
  %v135 = vand.u32 %v134, 4294901760
  %136 = vmatmul.f32.gmra.mxu0 %v135
  %v137 = vpop.f32.mrf.mxu0
  %v138 = vadd.f32 0.0, %v137
  %v139 = vand.u32 %v96, 4294901760
  %v140 = vsub.f32 %v96, %v139
  %v141 = vand.u32 %v140, 4294901760
  %v142 = vsub.f32 %v140, %v141
  %v143 = vand.u32 %v142, 4294901760
  %144 = vmatmul.f32.gmra.mxu0 %v143
  %v145 = vpop.f32.mrf.mxu0
  %v146 = vadd.f32 0.0, %v145
  %147 = vdwg.mxu0
  %148 = vmatpush.msra.mxu0 0.0
  %149 = vmatpush.msra.mxu0 0.0
  %150 = vmatpush.msra.mxu0 0.0
  %151 = vmatpush.msra.mxu0 0.0
  %152 = vmatpush.msra.mxu0 0.0
  %153 = vmatpush.msra.mxu0 0.0
  %154 = vmatpush.msra.mxu0 0.0
  %155 = vmatpush.msra.mxu0 0.0
  %156 = vmatpush.msra.mxu0 0.0
  %157 = vmatpush.msra.mxu0 0.0
  %158 = vmatpush.msra.mxu0 0.0
  %159 = vmatpush.msra.mxu0 0.0
  %160 = vmatpush.msra.mxu0 0.0
  %161 = vmatpush.msra.mxu0 0.0
  %162 = vmatpush.msra.mxu0 0.0
  %v163 = vand.u32 %v84, 4294901760
  %v164 = vsub.f32 %v84, %v163
  %v165 = vand.u32 %v164, 4294901760
  %v166 = vsub.f32 %v164, %v165
  %v167 = vand.u32 %v166, 4294901760
  %168 = vmatpush.msra.mxu0 %v167
  %v169 = vand.u32 %v87, 4294901760
  %170 = vmatmul.f32.gmra.mxu0 %v169
  %v171 = vpop.f32.mrf.mxu0
  %v172 = vadd.f32 %v122, %v171
  %v173 = vand.u32 %v90, 4294901760
  %174 = vmatmul.f32.gmra.mxu0 %v173
  %v175 = vpop.f32.mrf.mxu0
  %v176 = vadd.f32 %v130, %v175
  %v177 = vand.u32 %v93, 4294901760
  %178 = vmatmul.f32.gmra.mxu0 %v177
  %v179 = vpop.f32.mrf.mxu0
  %v180 = vadd.f32 %v138, %v179
  %v181 = vand.u32 %v96, 4294901760
  %182 = vmatmul.f32.gmra.mxu0 %v181
  %v183 = vpop.f32.mrf.mxu0
  %v184 = vadd.f32 %v146, %v183
  %185 = vdwg.mxu0
  %186 = vmatpush.msra.mxu0 0.0
  %187 = vmatpush.msra.mxu0 0.0
  %188 = vmatpush.msra.mxu0 0.0
  %189 = vmatpush.msra.mxu0 0.0
  %190 = vmatpush.msra.mxu0 0.0
  %191 = vmatpush.msra.mxu0 0.0
  %192 = vmatpush.msra.mxu0 0.0
  %193 = vmatpush.msra.mxu0 0.0
  %194 = vmatpush.msra.mxu0 0.0
  %195 = vmatpush.msra.mxu0 0.0
  %196 = vmatpush.msra.mxu0 0.0
  %197 = vmatpush.msra.mxu0 0.0
  %198 = vmatpush.msra.mxu0 0.0
  %199 = vmatpush.msra.mxu0 0.0
  %200 = vmatpush.msra.mxu0 0.0
  %v201 = vand.u32 %v84, 4294901760
  %v202 = vsub.f32 %v84, %v201
  %203 = vmatpush.msra.mxu0 %v202
  %v204 = vand.u32 %v87, 4294901760
  %v205 = vsub.f32 %v87, %v204
  %206 = vmatmul.f32.gmra.mxu0 %v205
  %v207 = vpop.f32.mrf.mxu0
  %v208 = vadd.f32 %v172, %v207
  %v209 = vand.u32 %v90, 4294901760
  %v210 = vsub.f32 %v90, %v209
  %211 = vmatmul.f32.gmra.mxu0 %v210
  %v212 = vpop.f32.mrf.mxu0
  %v213 = vadd.f32 %v176, %v212
  %v214 = vand.u32 %v93, 4294901760
  %v215 = vsub.f32 %v93, %v214
  %216 = vmatmul.f32.gmra.mxu0 %v215
  %v217 = vpop.f32.mrf.mxu0
  %v218 = vadd.f32 %v180, %v217
  %v219 = vand.u32 %v96, 4294901760
  %v220 = vsub.f32 %v96, %v219
  %221 = vmatmul.f32.gmra.mxu0 %v220
  %v222 = vpop.f32.mrf.mxu0
  %v223 = vadd.f32 %v184, %v222
  %224 = vdwg.mxu0
  %225 = vmatpush.msra.mxu0 0.0
  %226 = vmatpush.msra.mxu0 0.0
  %227 = vmatpush.msra.mxu0 0.0
  %228 = vmatpush.msra.mxu0 0.0
  %229 = vmatpush.msra.mxu0 0.0
  %230 = vmatpush.msra.mxu0 0.0
  %231 = vmatpush.msra.mxu0 0.0
  %232 = vmatpush.msra.mxu0 0.0
  %233 = vmatpush.msra.mxu0 0.0
  %234 = vmatpush.msra.mxu0 0.0
  %235 = vmatpush.msra.mxu0 0.0
  %236 = vmatpush.msra.mxu0 0.0
  %237 = vmatpush.msra.mxu0 0.0
  %238 = vmatpush.msra.mxu0 0.0
  %239 = vmatpush.msra.mxu0 0.0
  %v240 = vand.u32 %v84, 4294901760
  %241 = vmatpush.msra.mxu0 %v240
  %v242 = vand.u32 %v87, 4294901760
  %v243 = vsub.f32 %v87, %v242
  %v244 = vand.u32 %v243, 4294901760
  %245 = vmatmul.f32.gmra.mxu0 %v244
  %v246 = vpop.f32.mrf.mxu0
  %v247 = vadd.f32 %v208, %v246
  %v248 = vand.u32 %v90, 4294901760
  %v249 = vsub.f32 %v90, %v248
  %v250 = vand.u32 %v249, 4294901760
  %251 = vmatmul.f32.gmra.mxu0 %v250
  %v252 = vpop.f32.mrf.mxu0
  %v253 = vadd.f32 %v213, %v252
  %v254 = vand.u32 %v93, 4294901760
  %v255 = vsub.f32 %v93, %v254
  %v256 = vand.u32 %v255, 4294901760
  %257 = vmatmul.f32.gmra.mxu0 %v256
  %v258 = vpop.f32.mrf.mxu0
  %v259 = vadd.f32 %v218, %v258
  %v260 = vand.u32 %v96, 4294901760
  %v261 = vsub.f32 %v96, %v260
  %v262 = vand.u32 %v261, 4294901760
  %263 = vmatmul.f32.gmra.mxu0 %v262
  %v264 = vpop.f32.mrf.mxu0
  %v265 = vadd.f32 %v223, %v264
  %266 = vdwg.mxu0
  %267 = vmatpush.msra.mxu0 0.0
  %268 = vmatpush.msra.mxu0 0.0
  %269 = vmatpush.msra.mxu0 0.0
  %270 = vmatpush.msra.mxu0 0.0
  %271 = vmatpush.msra.mxu0 0.0
  %272 = vmatpush.msra.mxu0 0.0
  %273 = vmatpush.msra.mxu0 0.0
  %274 = vmatpush.msra.mxu0 0.0
  %275 = vmatpush.msra.mxu0 0.0
  %276 = vmatpush.msra.mxu0 0.0
  %277 = vmatpush.msra.mxu0 0.0
  %278 = vmatpush.msra.mxu0 0.0
  %279 = vmatpush.msra.mxu0 0.0
  %280 = vmatpush.msra.mxu0 0.0
  %281 = vmatpush.msra.mxu0 0.0
  %v282 = vand.u32 %v84, 4294901760
  %v283 = vsub.f32 %v84, %v282
  %v284 = vand.u32 %v283, 4294901760
  %285 = vmatpush.msra.mxu0 %v284
  %v286 = vand.u32 %v87, 4294901760
  %287 = vmatmul.f32.gmra.mxu0 %v286
  %v288 = vpop.f32.mrf.mxu0
  %v289 = vadd.f32 %v247, %v288
  %v290 = vand.u32 %v90, 4294901760
  %291 = vmatmul.f32.gmra.mxu0 %v290
  %v292 = vpop.f32.mrf.mxu0
  %v293 = vadd.f32 %v253, %v292
  %v294 = vand.u32 %v93, 4294901760
  %295 = vmatmul.f32.gmra.mxu0 %v294
  %v296 = vpop.f32.mrf.mxu0
  %v297 = vadd.f32 %v259, %v296
  %v298 = vand.u32 %v96, 4294901760
  %299 = vmatmul.f32.gmra.mxu0 %v298
  %v300 = vpop.f32.mrf.mxu0
  %v301 = vadd.f32 %v265, %v300
  %302 = vdwg.mxu0
  %303 = vmatpush.msra.mxu0 0.0
  %304 = vmatpush.msra.mxu0 0.0
  %305 = vmatpush.msra.mxu0 0.0
  %306 = vmatpush.msra.mxu0 0.0
  %307 = vmatpush.msra.mxu0 0.0
  %308 = vmatpush.msra.mxu0 0.0
  %309 = vmatpush.msra.mxu0 0.0
  %310 = vmatpush.msra.mxu0 0.0
  %311 = vmatpush.msra.mxu0 0.0
  %312 = vmatpush.msra.mxu0 0.0
  %313 = vmatpush.msra.mxu0 0.0
  %314 = vmatpush.msra.mxu0 0.0
  %315 = vmatpush.msra.mxu0 0.0
  %316 = vmatpush.msra.mxu0 0.0
  %317 = vmatpush.msra.mxu0 0.0
  %v318 = vand.u32 %v84, 4294901760
  %319 = vmatpush.msra.mxu0 %v318
  %v320 = vand.u32 %v87, 4294901760
  %321 = vmatmul.f32.gmra.mxu0 %v320
  %v322 = vpop.f32.mrf.mxu0
  %v323 = vadd.f32 %v289, %v322
  %v324 = vand.u32 %v90, 4294901760
  %325 = vmatmul.f32.gmra.mxu0 %v324
  %v326 = vpop.f32.mrf.mxu0
  %v327 = vadd.f32 %v293, %v326
  %v328 = vand.u32 %v93, 4294901760
  %329 = vmatmul.f32.gmra.mxu0 %v328
  %v330 = vpop.f32.mrf.mxu0
  %v331 = vadd.f32 %v297, %v330
  %v332 = vand.u32 %v96, 4294901760
  %333 = vmatmul.f32.gmra.mxu0 %v332
  %v334 = vpop.f32.mrf.mxu0
  %v335 = vadd.f32 %v301, %v334
  %336 = vdwg.mxu0
  %337 = vst [vmem:[%s3] sm:$0xff] %v323
  %338 = vst [vmem:[%s3 + $0x8] sm:$0xff] %v327
  %339 = vst [vmem:[%s3 + $0x10] sm:$0xff] %v331
  %340 = vst [vmem:[%s3 + $0x18] sm:$0xff] %v335
  // Predicated region
  $region14: #{tpu_custom_call.1} parent=0 // pred_check
    _
  $region15: #{tpu_custom_call.1} parent=0 // pred_check_branch
    %342 = sbr.rel (0) target = $region17
  $region16: #{tpu_custom_call.1} parent=0 // pred_region
    _
  $region17: #{tpu_custom_call.1} parent=0 // pred_fallthru
    _
  // Predicated region
  $region18: #{tpu_custom_call.1} parent=0 // pred_check
    _
  $region19: #{tpu_custom_call.1} parent=0 // pred_check_branch
    %344 = sbr.rel (0) target = $region21
  $region20: #{tpu_custom_call.1} parent=0 // pred_region
    _
  $region21: #{tpu_custom_call.1} parent=0 // pred_fallthru
    _

</llo_original>
